<compile_context>
chip_gen: v6e
topology: v6e:2x2x1
jax: 0.10.0
libtpu: 0.0.40
codegen_flags: <defaults>
</compile_context>

<pallas_src>
import functools

import jax
import jax.numpy as jnp
import numpy as np
from jax.experimental import pallas as pl
from jax.experimental.pallas import tpu as pltpu

_BN_EPS = 1e-3  # ultralytics Conv uses BatchNorm2d(eps=0.001)
_VMEM_LIMIT = 32 * 1024 * 1024


# ----------------------------------------------------------------------------
# Kernels
# ----------------------------------------------------------------------------
def _pw_bn_kernel(x_ref, w_ref, scale_ref, bias_ref, o_ref):
    """1x1 conv + folded BN (no activation).

    x_ref: (TILE_M, Cin) f32, w_ref: (Cin, Cout) bf16,
    scale_ref/bias_ref: (1, Cout) f32, o_ref: (TILE_M, Cout) f32.
    """
    acc = jnp.dot(x_ref[...].astype(jnp.bfloat16),
                  w_ref[...].astype(jnp.bfloat16),
                  preferred_element_type=jnp.float32)
    o_ref[...] = (acc * scale_ref[...] + bias_ref[...]).astype(o_ref.dtype)


def _attn_head_kernel(q_ref, k_ref, v_ref, o_ref, *, scale):
    """Full attention for one (batch, head).

    q_ref/k_ref: (1, kd, N), v_ref: (1, hd, N), o_ref: (1, hd, N).
    Lane dim is N (dense); matmuls in bf16 with f32 accumulation; softmax in f32.
    """
    q = q_ref[0].astype(jnp.bfloat16)        # (kd, N)
    k = k_ref[0].astype(jnp.bfloat16)        # (kd, N)
    v = v_ref[0].astype(jnp.bfloat16)        # (hd, N)

    # s[i, j] = sum_d q[d, i] * k[d, j]
    s = jax.lax.dot_general(q, k, (((0,), (0,)), ((), ())),
                            preferred_element_type=jnp.float32) * scale  # (N, N)
    m = jnp.max(s, axis=-1, keepdims=True)
    e = jnp.exp(s - m)
    p = (e / jnp.sum(e, axis=-1, keepdims=True)).astype(jnp.bfloat16)    # (N, N)

    # out[d, i] = sum_j v[d, j] * p[i, j]
    out = jax.lax.dot_general(v, p, (((1,), (1,)), ((), ())),
                              preferred_element_type=jnp.float32)        # (hd, N)
    o_ref[...] = out[None].astype(o_ref.dtype)


def _pe_add_proj_kernel(vp_ref, attn_ref, pe_w_ref, pe_s_ref, pe_b_ref,
                        pw_ref, pr_s_ref, pr_b_ref, o_ref):
    """Fused: depthwise 3x3 conv + BN (pe) on v, add attention output, 1x1 proj + BN.

    vp_ref:   (1, H+2, W+2, C) f32  padded v image
    attn_ref: (1, H, W, C)     f32  attention output image
    pe_w_ref: (9, C) f32 depthwise taps (row = kh*3+kw)
    pw_ref:   (C, C) bf16 proj weight;  *_s/_b: (1, C) folded BN scale/bias
    o_ref:    (1, H, W, C) f32
    """
    H, W, C = o_ref.shape[1], o_ref.shape[2], o_ref.shape[3]
    vp = vp_ref[0]                                        # (H+2, W+2, C)

    # Depthwise conv: keep (H, W, C) layout (channels on lanes) -> pure VPU work,
    # no per-tap reshape / retiling.
    acc = jnp.zeros((H, W, C), jnp.float32)
    for kh in range(3):
        for kw in range(3):
            acc = acc + vp[kh:kh + H, kw:kw + W, :] * pe_w_ref[kh * 3 + kw, :]
    pe = acc * pe_s_ref[0, :] + pe_b_ref[0, :]

    x = pe + attn_ref[0]                                  # (H, W, C) f32

    # Projection: 1x1 conv as a matmul over the C (lane) dim.
    y = jnp.dot(x.reshape(H * W, C).astype(jnp.bfloat16),
                pw_ref[...].astype(jnp.bfloat16),
                preferred_element_type=jnp.float32)
    y = y * pr_s_ref[...] + pr_b_ref[...]
    o_ref[...] = y.reshape(1, H, W, C).astype(o_ref.dtype)


# ----------------------------------------------------------------------------
# pallas_call wrappers
# ----------------------------------------------------------------------------
def _pick_tile_m(m):
    for t in (512, 256, 128, 64, 32, 16, 8):
        if m % t == 0:
            return t
    return m


def pointwise_conv_bn(x_flat, w, scale, bias):
    """x_flat: (M, Cin) f32, w: (Cin, Cout) bf16 -> (M, Cout) f32."""
    M, Cin = x_flat.shape
    Cout = w.shape[1]
    tm = _pick_tile_m(M)
    return pl.pallas_call(
        _pw_bn_kernel,
        out_shape=jax.ShapeDtypeStruct((M, Cout), jnp.float32),
        grid=(M // tm,),
        in_specs=[
            pl.BlockSpec((tm, Cin), lambda i: (i, 0)),
            pl.BlockSpec((Cin, Cout), lambda i: (0, 0)),
            pl.BlockSpec((1, Cout), lambda i: (0, 0)),
            pl.BlockSpec((1, Cout), lambda i: (0, 0)),
        ],
        out_specs=pl.BlockSpec((tm, Cout), lambda i: (i, 0)),
        compiler_params=pltpu.CompilerParams(
            dimension_semantics=("parallel",),
            vmem_limit_bytes=_VMEM_LIMIT),
    )(x_flat, w, scale.reshape(1, Cout), bias.reshape(1, Cout))


def attention_heads(q, k, v, scale):
    """q/k: (BH, kd, N), v: (BH, hd, N) -> (BH, hd, N) f32."""
    BH, kd, N = q.shape
    hd = v.shape[1]
    kernel = functools.partial(_attn_head_kernel, scale=scale)
    return pl.pallas_call(
        kernel,
        out_shape=jax.ShapeDtypeStruct((BH, hd, N), jnp.float32),
        grid=(BH,),
        in_specs=[
            pl.BlockSpec((1, kd, N), lambda i: (i, 0, 0)),
            pl.BlockSpec((1, kd, N), lambda i: (i, 0, 0)),
            pl.BlockSpec((1, hd, N), lambda i: (i, 0, 0)),
        ],
        out_specs=pl.BlockSpec((1, hd, N), lambda i: (i, 0, 0)),
        compiler_params=pltpu.CompilerParams(
            dimension_semantics=("parallel",),
            vmem_limit_bytes=_VMEM_LIMIT),
    )(q, k, v)


def pe_add_proj(v_img, attn_img, pe_p, proj_p):
    """v_img/attn_img: (B, H, W, C) f32 -> (B, H, W, C) f32."""
    B, H, W, C = v_img.shape
    # TODO(synk): for large feature maps (esp. v7x 64 MiB VMEM) tile this kernel
    # over H-strips and handle the 3x3 halo inside the kernel instead of jnp.pad.
    vp = jnp.pad(v_img, ((0, 0), (1, 1), (1, 1), (0, 0)))
    pe_w = pe_p["w"].reshape(9, C)
    return pl.pallas_call(
        _pe_add_proj_kernel,
        out_shape=jax.ShapeDtypeStruct((B, H, W, C), jnp.float32),
        grid=(B,),
        in_specs=[
            pl.BlockSpec((1, H + 2, W + 2, C), lambda b: (b, 0, 0, 0)),
            pl.BlockSpec((1, H, W, C), lambda b: (b, 0, 0, 0)),
            pl.BlockSpec((9, C), lambda b: (0, 0)),
            pl.BlockSpec((1, C), lambda b: (0, 0)),
            pl.BlockSpec((1, C), lambda b: (0, 0)),
            pl.BlockSpec((C, C), lambda b: (0, 0)),
            pl.BlockSpec((1, C), lambda b: (0, 0)),
            pl.BlockSpec((1, C), lambda b: (0, 0)),
        ],
        out_specs=pl.BlockSpec((1, H, W, C), lambda b: (b, 0, 0, 0)),
        compiler_params=pltpu.CompilerParams(
            dimension_semantics=("parallel",),
            vmem_limit_bytes=_VMEM_LIMIT),
    )(vp, attn_img, pe_w,
      pe_p["scale"].reshape(1, C), pe_p["bias"].reshape(1, C),
      proj_p["w"],
      proj_p["scale"].reshape(1, C), proj_p["bias"].reshape(1, C))


# ----------------------------------------------------------------------------
# Parameters (synthetic, deterministic; BN folded into scale/bias)
# ----------------------------------------------------------------------------
def _fold_bn(key, cout):
    g_key, b_key, m_key, v_key = jax.random.split(key, 4)
    gamma = 1.0 + 0.1 * jax.random.normal(g_key, (cout,), jnp.float32)
    beta = 0.05 * jax.random.normal(b_key, (cout,), jnp.float32)
    mean = 0.05 * jax.random.normal(m_key, (cout,), jnp.float32)
    var = 0.5 + jax.random.uniform(v_key, (cout,), jnp.float32)
    scale = gamma / jnp.sqrt(var + _BN_EPS)
    bias = beta - mean * scale
    return scale, bias


def make_attention_params(key, dim, num_heads=8, attn_ratio=0.5):
    head_dim = dim // num_heads
    key_dim = int(head_dim * attn_ratio)
    h = dim + key_dim * num_heads * 2
    k_qkv, k_proj, k_pe, k_bn1, k_bn2, k_bn3 = jax.random.split(key, 6)
    qkv_w = (0.1 * jax.random.normal(k_qkv, (dim, h), jnp.float32)).astype(jnp.bfloat16)
    proj_w = (0.1 * jax.random.normal(k_proj, (dim, dim), jnp.float32)).astype(jnp.bfloat16)
    pe_w = 0.1 * jax.random.normal(k_pe, (3, 3, dim), jnp.float32)   # depthwise (kh,kw,C)
    qs, qb = _fold_bn(k_bn1, h)
    ps, pb = _fold_bn(k_bn2, dim)
    pes, peb = _fold_bn(k_bn3, dim)
    return {
        "num_heads": num_heads, "key_dim": key_dim, "head_dim": head_dim,
        "qkv": {"w": qkv_w, "scale": qs, "bias": qb},
        "proj": {"w": proj_w, "scale": ps, "bias": pb},
        "pe": {"w": pe_w, "scale": pes, "bias": peb},
    }


# ----------------------------------------------------------------------------
# Forward (Pallas)
# ----------------------------------------------------------------------------
def attention_forward(x_nchw, params):
    num_heads = params["num_heads"]
    kd = params["key_dim"]
    B, C, H, W = x_nchw.shape
    hd = C // num_heads
    N = H * W
    scale = float(kd) ** -0.5

    # NCHW -> NHWC -> (B*N, C)
    x = jnp.transpose(x_nchw, (0, 2, 3, 1)).reshape(B * N, C)

    # qkv 1x1 conv + BN   -> (B*N, C + 2*nh*kd), channel order = head-major
    qkv = pointwise_conv_bn(x, params["qkv"]["w"],
                            params["qkv"]["scale"], params["qkv"]["bias"])
    qkv = qkv.reshape(B, N, num_heads, 2 * kd + hd)

    # Per-head, channel-first (lane = N) layouts for the attention kernel.
    q = qkv[..., :kd].transpose(0, 2, 3, 1).reshape(B * num_heads, kd, N)
    k = qkv[..., kd:2 * kd].transpose(0, 2, 3, 1).reshape(B * num_heads, kd, N)
    v4 = qkv[..., 2 * kd:]                                     # (B, N, nh, hd)
    v = v4.transpose(0, 2, 3, 1).reshape(B * num_heads, hd, N)

    attn = attention_heads(q, k, v, scale)                     # (B*nh, hd, N)
    attn_img = attn.reshape(B, C, N).transpose(0, 2, 1).reshape(B, H, W, C)
    v_img = v4.reshape(B, H, W, C)                             # matches v.reshape(B,C,H,W)

    # Fused pe (depthwise 3x3 + BN) + residual add + proj (1x1 + BN)
    out = pe_add_proj(v_img, attn_img, params["pe"], params["proj"])
    return jnp.transpose(out, (0, 3, 1, 2))                    # NHWC -> NCHW


# ----------------------------------------------------------------------------
# Pure-JAX reference (same math / same bf16 cast points, no Pallas)
# ----------------------------------------------------------------------------
def attention_reference(x_nchw, params):
    num_heads = params["num_heads"]
    kd = params["key_dim"]
    B, C, H, W = x_nchw.shape
    hd = C // num_heads
    N = H * W
    scale = float(kd) ** -0.5
    bf16 = jnp.bfloat16

    x = jnp.transpose(x_nchw, (0, 2, 3, 1)).reshape(B, N, C)
    qkv = jnp.einsum("bnc,ch->bnh", x.astype(bf16), params["qkv"]["w"].astype(bf16),
                     preferred_element_type=jnp.float32)
    qkv = qkv * params["qkv"]["scale"] + params["qkv"]["bias"]
    qkv = qkv.reshape(B, N, num_heads, 2 * kd + hd)
    q, k, v = qkv[..., :kd], qkv[..., kd:2 * kd], qkv[..., 2 * kd:]

    s = jnp.einsum("bihd,bjhd->bhij", q.astype(bf16), k.astype(bf16),
                   preferred_element_type=jnp.float32) * scale
    m = jnp.max(s, axis=-1, keepdims=True)
    e = jnp.exp(s - m)
    p = e / jnp.sum(e, axis=-1, keepdims=True)
    o = jnp.einsum("bhij,bjhe->bihe", p.astype(bf16), v.astype(bf16),
                   preferred_element_type=jnp.float32)
    attn_img = o.reshape(B, H, W, C)
    v_img = v.reshape(B, H, W, C)

    vp = jnp.pad(v_img, ((0, 0), (1, 1), (1, 1), (0, 0)))
    pe = sum(vp[:, kh:kh + H, kw:kw + W, :] * params["pe"]["w"][kh, kw]
             for kh in range(3) for kw in range(3))
    pe = pe * params["pe"]["scale"] + params["pe"]["bias"]

    y = attn_img + pe
    out = jnp.einsum("bhwc,cd->bhwd", y.astype(bf16), params["proj"]["w"].astype(bf16),
                     preferred_element_type=jnp.float32)
    out = out * params["proj"]["scale"] + params["proj"]["bias"]
    return jnp.transpose(out, (0, 3, 1, 2))


# ----------------------------------------------------------------------------
if __name__ == "__main__":
    key = jax.random.PRNGKey(0)
    xkey, pkey = jax.random.split(key)

    B, dim, H, W = 4, 128, 16, 16        # num_heads=8 -> head_dim=16, key_dim=8
    num_heads = 8

    x = jax.random.normal(xkey, (B, dim, H, W), jnp.float32)
    params = make_attention_params(pkey, dim, num_heads=num_heads, attn_ratio=0.5)

    out = jax.block_until_ready(attention_forward(x, params))
    assert out.shape == (B, dim, H, W)

    ref = jax.block_until_ready(attention_reference(x, params))
    np.testing.assert_allclose(np.asarray(out), np.asarray(ref), rtol=2e-2, atol=2e-2)

    print("KERNEL_OK")
</pallas_src>

<mosaic_0001>
module attributes {stable_mosaic.version = 11 : i64} {
  func.func @_pw_bn_kernel(%arg0: i32, %arg1: memref<512x128xf32, #tpu.memory_space<vmem>>, %arg2: memref<128x256xbf16, #tpu.memory_space<vmem>>, %arg3: memref<1x256xf32, #tpu.memory_space<vmem>>, %arg4: memref<1x256xf32, #tpu.memory_space<vmem>>, %arg5: memref<512x256xf32, #tpu.memory_space<vmem>>) attributes {dimension_semantics = [#tpu.dimension_semantics<parallel>], iteration_bounds = array<i64: 2>, scalar_prefetch = 0 : i64, scratch_operands = 0 : i64, tpu.core_type = #tpu.core_type<tc>, window_params = [{transform_indices = @transform_0, window_bounds = array<i64: 512, 128>}, {pipeline_mode = #tpu.pipeline_mode<synchronous>, transform_indices = @transform_1, window_bounds = array<i64: 128, 256>}, {pipeline_mode = #tpu.pipeline_mode<synchronous>, transform_indices = @transform_2, window_bounds = array<i64: 1, 256>}, {pipeline_mode = #tpu.pipeline_mode<synchronous>, transform_indices = @transform_3, window_bounds = array<i64: 1, 256>}, {transform_indices = @transform_4, window_bounds = array<i64: 512, 256>}]} {
    %c0 = arith.constant 0 : index
    %c0_0 = arith.constant 0 : index
    %0 = vector.load %arg1[%c0, %c0_0] : memref<512x128xf32, #tpu.memory_space<vmem>>, vector<512x128xf32>
    %1 = arith.truncf %0 : vector<512x128xf32> to vector<512x128xbf16>
    %c0_1 = arith.constant 0 : index
    %c0_2 = arith.constant 0 : index
    %2 = vector.load %arg2[%c0_1, %c0_2] : memref<128x256xbf16, #tpu.memory_space<vmem>>, vector<128x256xbf16>
    %cst = arith.constant dense<0.000000e+00> : vector<512x256xf32>
    %3 = tpu.matmul %1, %2, %cst {dimension_numbers = #tpu.dot_dimension_numbers<[1], [0], [0], [1], [0, 0, 1, 1], [], []>} : vector<512x128xbf16>, vector<128x256xbf16>, vector<512x256xf32> -> vector<512x256xf32>
    %c0_3 = arith.constant 0 : index
    %c0_4 = arith.constant 0 : index
    %4 = vector.load %arg3[%c0_3, %c0_4] : memref<1x256xf32, #tpu.memory_space<vmem>>, vector<1x256xf32>
    %5 = vector.broadcast %4 : vector<1x256xf32> to vector<512x256xf32>
    %6 = arith.mulf %3, %5 : vector<512x256xf32>
    %c0_5 = arith.constant 0 : index
    %c0_6 = arith.constant 0 : index
    %7 = vector.load %arg4[%c0_5, %c0_6] : memref<1x256xf32, #tpu.memory_space<vmem>>, vector<1x256xf32>
    %8 = vector.broadcast %7 : vector<1x256xf32> to vector<512x256xf32>
    %9 = arith.addf %6, %8 : vector<512x256xf32>
    %c0_7 = arith.constant 0 : index
    %c0_8 = arith.constant 0 : index
    %10 = vector.load %arg5[%c0_7, %c0_8] : memref<512x256xf32, #tpu.memory_space<vmem>>, vector<512x256xf32>
    tpu.vector_store %arg5[%c0_7, %c0_8], %9 {strides = array<i32>} : memref<512x256xf32, #tpu.memory_space<vmem>>, vector<512x256xf32>,
    return
  }
  func.func @transform_0(%arg0: i32) -> (i32, i32) {
    %c0_i32 = arith.constant 0 : i32
    %c0_i32_0 = arith.constant 0 : i32
    return %arg0, %c0_i32 : i32, i32
  }
  func.func @transform_1(%arg0: i32) -> (i32, i32) {
    %c0_i32 = arith.constant 0 : i32
    %c0_i32_0 = arith.constant 0 : i32
    %c0_i32_1 = arith.constant 0 : i32
    return %c0_i32, %c0_i32_0 : i32, i32
  }
  func.func @transform_2(%arg0: i32) -> (i32, i32) {
    %c0_i32 = arith.constant 0 : i32
    %c0_i32_0 = arith.constant 0 : i32
    %c0_i32_1 = arith.constant 0 : i32
    return %c0_i32, %c0_i32_0 : i32, i32
  }
  func.func @transform_3(%arg0: i32) -> (i32, i32) {
    %c0_i32 = arith.constant 0 : i32
    %c0_i32_0 = arith.constant 0 : i32
    %c0_i32_1 = arith.constant 0 : i32
    return %c0_i32, %c0_i32_0 : i32, i32
  }
  func.func @transform_4(%arg0: i32) -> (i32, i32) {
    %c0_i32 = arith.constant 0 : i32
    %c0_i32_0 = arith.constant 0 : i32
    return %arg0, %c0_i32 : i32, i32
  }
}

</mosaic_0001>

<llo_original>
// kernel: tpu_custom_call.1
$region0: #{tpu_custom_call.1}
  #allocation0 [shape = 'u32[]', space=smem, size = 0x4, offset = 0x4, fixed_abs, tag = 'smem constant byte address 0x4 - core index']
  #allocation1 [shape = 'u32[144,128]{1,0:T(1,128)}', space=vmem, size = 0x12000, scoped, tag = 'internal scratch']
  %s0 = inlined_call_operand.hbm [shape: f32[1024,128], index: 0, kind: input, shape index: {}]
  %s1 = inlined_call_operand.hbm [shape: bf16[128,256], index: 1, kind: input, shape index: {}]
  %s2 = inlined_call_operand.vmem [shape: f32[1,256], index: 2, kind: input, shape index: {}]
  %s3 = inlined_call_operand.vmem [shape: f32[1,256], index: 3, kind: input, shape index: {}]
  %s4 = inlined_call_operand.hbm [shape: f32[1024,256], index: 4, kind: output, shape index: {}]
  %s5 = sld [smem:[#allocation0]]
  $region57: #{tpu_custom_call.1} parent=0
    _
  %s7 = ssub.s32 1, %s5
  %s8 = scalar_select 0, %s7, %s5
  $region1: #{tpu_custom_call.1} parent=0
    #allocation2 [shape = 'u8[524288]{0}', space=vmem, size = 0x80000, scoped, tag = 'input window, operand 0']
    #allocation3 [shape = 's32[2]{0}', space=sflag, size = 0x8, scoped, tag = 'scoped memory for tpu_custom_call.1']
    #allocation4 [shape = 's32[2]{0}', space=sflag, size = 0x8, scoped, tag = 'scoped memory for tpu_custom_call.1']
    #allocation5 [shape = 'u8[65536]{0}', space=vmem, size = 0x10000, scoped, tag = 'input window, operand 1, single buffered']
    #allocation6 [shape = 's32[1]{0}', space=sflag, size = 0x4, scoped, tag = 'scoped memory for tpu_custom_call.1']
    #allocation7 [shape = 'u8[1048576]{0}', space=vmem, size = 0x100000, scoped, tag = 'output window, operand 0']
    %9 = vsyncpa [#allocation3], 0
    %s10 = scalar_lea.sflag [#allocation3], 1
    %11 = vsyncpa %s10, 0
    %12 = vsyncpa [#allocation6], 0
    %13 = vsyncpa [#allocation4], 0
    %s14 = scalar_lea.sflag [#allocation4], 1
    %15 = vsyncpa %s14, 0
    loop: start=0, step=1, limit=4
    $region2: #{tpu_custom_call.1} parent=1 // loop_pre_header
      _
    $region3: #{tpu_custom_call.1} parent=1 // loop_header
      %s17 = sphi 0, %s21
      %p18 = scmp.ge.s32.totalorder %s17, 4
      %s27 = sphi 0, %s29
      %s30 = sphi 0, %s27
      %s31 = sphi 0, %s30
      %s47 = sphi 0, %s31
      %s51 = sphi 0, %s51
      %s53 = sphi 0, %s51
      %s54 = sphi 0, %s53
      %s68 = sphi 0, %s54
      %s72 = sphi 0, %s72
      %s74 = sphi 0, %s72
      %s75 = sphi 0, %s74
      %s89 = sphi 0, %s75
      %s93 = sphi 0, %s93
      %s95 = sphi 0, %s93
      %s96 = sphi 0, %s95
      %s110 = sphi 0, %s96
      %s116 = sphi 0, %s118
      %s119 = sphi 0, %s116
      %s120 = sphi 0, %s119
      %s136 = sphi 0, %s120
    $region4: #{tpu_custom_call.1} parent=1 // loop_header_branch
      %20 = sbr.rel (%p18) target = $region8
    $region5: #{tpu_custom_call.1} parent=1 // loop_body
      %s22 = ssub.s32 %s17, 1
      %s23 = ssub.s32 %s17, 2
      %s24 = sadd.s32 %s17, 1
      %s25 = ssub.s32 %s17, %s24
      %p26 = scmp.eq.s32.totalorder %s25, 0
      %s28 = sadd.s32 %s27, 1
      %s29 = scalar_select %p26, %s27, %s28
      %p32 = pneg %p26
      %p33 = scmp.eq.s32.totalorder %s17, 1
      %p34 = por %p32, %p33
      %p35 = scmp.ne.s32.totalorder %s27, %s30
      %p36 = scmp.eq.s32.totalorder %s17, 0
      %p37 = por %p35, %p36
      %p38 = scmp.ne.s32.totalorder %s27, %s30
      %p39 = scmp.eq.s32.totalorder %s22, 1
      %p40 = por %p38, %p39
      %p41 = scmp.ne.s32.totalorder %s30, %s31
      %p42 = scmp.eq.s32.totalorder %s22, 0
      %p43 = por %p41, %p42
      %p44 = scmp.ne.s32.totalorder %s30, %s31
      %p45 = scmp.eq.s32.totalorder %s23, 1
      %p46 = por %p44, %p45
      %p48 = scmp.ne.s32.totalorder %s31, %s47
      %p49 = scmp.eq.s32.totalorder %s23, 0
      %p50 = por %p48, %p49
      %s52 = sadd.s32 %s51, 1
      %p55 = scmp.eq.s32.totalorder %s17, 1
      %p56 = scmp.ne.s32.totalorder %s51, %s53
      %p57 = scmp.eq.s32.totalorder %s17, 0
      %p58 = por %p56, %p57
      %p59 = scmp.ne.s32.totalorder %s51, %s53
      %p60 = scmp.eq.s32.totalorder %s22, 1
      %p61 = por %p59, %p60
      %p62 = scmp.ne.s32.totalorder %s53, %s54
      %p63 = scmp.eq.s32.totalorder %s22, 0
      %p64 = por %p62, %p63
      %p65 = scmp.ne.s32.totalorder %s53, %s54
      %p66 = scmp.eq.s32.totalorder %s23, 1
      %p67 = por %p65, %p66
      %p69 = scmp.ne.s32.totalorder %s54, %s68
      %p70 = scmp.eq.s32.totalorder %s23, 0
      %p71 = por %p69, %p70
      %s73 = sadd.s32 %s72, 1
      %p76 = scmp.eq.s32.totalorder %s17, 1
      %p77 = scmp.ne.s32.totalorder %s72, %s74
      %p78 = scmp.eq.s32.totalorder %s17, 0
      %p79 = por %p77, %p78
      %p80 = scmp.ne.s32.totalorder %s72, %s74
      %p81 = scmp.eq.s32.totalorder %s22, 1
      %p82 = por %p80, %p81
      %p83 = scmp.ne.s32.totalorder %s74, %s75
      %p84 = scmp.eq.s32.totalorder %s22, 0
      %p85 = por %p83, %p84
      %p86 = scmp.ne.s32.totalorder %s74, %s75
      %p87 = scmp.eq.s32.totalorder %s23, 1
      %p88 = por %p86, %p87
      %p90 = scmp.ne.s32.totalorder %s75, %s89
      %p91 = scmp.eq.s32.totalorder %s23, 0
      %p92 = por %p90, %p91
      %s94 = sadd.s32 %s93, 1
      %p97 = scmp.eq.s32.totalorder %s17, 1
      %p98 = scmp.ne.s32.totalorder %s93, %s95
      %p99 = scmp.eq.s32.totalorder %s17, 0
      %p100 = por %p98, %p99
      %p101 = scmp.ne.s32.totalorder %s93, %s95
      %p102 = scmp.eq.s32.totalorder %s22, 1
      %p103 = por %p101, %p102
      %p104 = scmp.ne.s32.totalorder %s95, %s96
      %p105 = scmp.eq.s32.totalorder %s22, 0
      %p106 = por %p104, %p105
      %p107 = scmp.ne.s32.totalorder %s95, %s96
      %p108 = scmp.eq.s32.totalorder %s23, 1
      %p109 = por %p107, %p108
      %p111 = scmp.ne.s32.totalorder %s96, %s110
      %p112 = scmp.eq.s32.totalorder %s23, 0
      %p113 = por %p111, %p112
      %s114 = ssub.s32 %s17, %s24
      %p115 = scmp.eq.s32.totalorder %s114, 0
      %s117 = sadd.s32 %s116, 1
      %s118 = scalar_select %p115, %s116, %s117
      %p121 = pneg %p115
      %p122 = scmp.eq.s32.totalorder %s17, 1
      %p123 = por %p121, %p122
      %p124 = scmp.ne.s32.totalorder %s116, %s119
      %p125 = scmp.eq.s32.totalorder %s17, 0
      %p126 = por %p124, %p125
      %p127 = scmp.ne.s32.totalorder %s116, %s119
      %p128 = scmp.eq.s32.totalorder %s22, 1
      %p129 = por %p127, %p128
      %p130 = scmp.ne.s32.totalorder %s119, %s120
      %p131 = scmp.eq.s32.totalorder %s22, 0
      %p132 = por %p130, %p131
      %p133 = scmp.ne.s32.totalorder %s119, %s120
      %p134 = scmp.eq.s32.totalorder %s23, 1
      %p135 = por %p133, %p134
      %p137 = scmp.ne.s32.totalorder %s120, %s136
      %p138 = scmp.eq.s32.totalorder %s23, 0
      %p139 = por %p137, %p138
      %p140 = scmp.le.s32.totalorder 1, %s17
      %p141 = scmp.lt.s32.totalorder %s17, 3
      %p142 = pnand %p140, %p141
      %p143 = pneg %p142
      // Predicated region
      $region9: #{tpu_custom_call.1} parent=5 // pred_check
        _
      $region10: #{tpu_custom_call.1} parent=5 // pred_check_branch
        %145 = sbr.rel (%p142) target = $region12
      $region11: #{tpu_custom_call.1} parent=5 // pred_region
        %s146 = ssub.s32 %s17, 1
        // Predicated region
        $region13: #{tpu_custom_call.1} parent=11 // pred_check
          %p147 = pneg %p64
        $region14: #{tpu_custom_call.1} parent=11 // pred_check_branch
          %149 = sbr.rel (%p147) target = $region16
        $region15: #{tpu_custom_call.1} parent=11 // pred_region
          %s151 = ssub.s32 2048, 2048
          %152 = vsyncadd [#allocation6], %s151
          %s153 = sshll.u32 [#allocation5], 4
          %s154 = int_to_ptr.vmem [resolvable:$true] %s153
          %159 = dma.hbm_to_vmem [thread:$0]  %s1, 2048, %s154, [#allocation6], 128, 128, 8
        $region16: #{tpu_custom_call.1} parent=11 // pred_fallthru
          _
        // Predicated region
        $region17: #{tpu_custom_call.1} parent=11 // pred_check
          %p160 = pneg %p85
        $region18: #{tpu_custom_call.1} parent=11 // pred_check_branch
          %162 = sbr.rel (%p160) target = $region20
        $region19: #{tpu_custom_call.1} parent=11 // pred_region
          _
        $region20: #{tpu_custom_call.1} parent=11 // pred_fallthru
          _
        // Predicated region
        $region21: #{tpu_custom_call.1} parent=11 // pred_check
          %p163 = pneg %p106
        $region22: #{tpu_custom_call.1} parent=11 // pred_check_branch
          %165 = sbr.rel (%p163) target = $region24
        $region23: #{tpu_custom_call.1} parent=11 // pred_region
          _
        $region24: #{tpu_custom_call.1} parent=11 // pred_fallthru
          _
      $region12: #{tpu_custom_call.1} parent=5 // pred_fallthru
        _
      %p166 = scmp.lt.s32.totalorder %s17, 2
      // Predicated region
      $region25: #{tpu_custom_call.1} parent=5 // pred_check
        %p167 = pneg %p166
      $region26: #{tpu_custom_call.1} parent=5 // pred_check_branch
        %169 = sbr.rel (%p167) target = $region28
      $region27: #{tpu_custom_call.1} parent=5 // pred_region
        // Predicated region
        $region29: #{tpu_custom_call.1} parent=27 // pred_check
          %p170 = pneg %p37
        $region30: #{tpu_custom_call.1} parent=27 // pred_check_branch
          %172 = sbr.rel (%p170) target = $region32
        $region31: #{tpu_custom_call.1} parent=27 // pred_region
          %s173 = sand.u32 %s27, 1
          %s174 = scalar_lea.sflag [#allocation3], %s173
          %s175 = sand.u32 %s27, 1
          %s176 = smul.addr %s175, 512
          %s177 = scalar_lea.vmem [#allocation2], %s176
          %s178 = smul.u32 64, %s17
          %s180 = ssub.s32 8192, 8192
          %181 = vsyncadd %s174, %s180
          %s182 = smul.addr %s178, 128
          %s183 = scalar_lea.hbm %s0, %s182
          %s184 = sshll.u32 %s177, 4
          %s185 = int_to_ptr.vmem [resolvable:$true] %s184
          %190 = dma.hbm_to_vmem [thread:$0]  %s183, 8192, %s185, %s174, 128, 128, 8
        $region32: #{tpu_custom_call.1} parent=27 // pred_fallthru
          _
      $region28: #{tpu_custom_call.1} parent=5 // pred_fallthru
        _
      %p191 = scmp.le.s32.totalorder 1, %s17
      %p192 = scmp.lt.s32.totalorder %s17, 3
      %p193 = pnand %p191, %p192
      %p194 = pneg %p193
      // Predicated region
      $region33: #{tpu_custom_call.1} parent=5 // pred_check
        _
      $region34: #{tpu_custom_call.1} parent=5 // pred_check_branch
        %196 = sbr.rel (%p193) target = $region36
      $region35: #{tpu_custom_call.1} parent=5 // pred_region
        %s197 = ssub.s32 %s17, 1
        %s198 = sand.u32 %s30, 1
        %s199 = scalar_lea.sflag [#allocation3], %s198
        %s200 = sand.u32 %s30, 1
        %s201 = smul.addr %s200, 512
        %s202 = scalar_lea.vmem [#allocation2], %s201
        // Predicated region
        $region37: #{tpu_custom_call.1} parent=35 // pred_check
          %p203 = pneg %p43
        $region38: #{tpu_custom_call.1} parent=35 // pred_check_branch
          %205 = sbr.rel (%p203) target = $region40
        $region39: #{tpu_custom_call.1} parent=35 // pred_region
          %206 = dma.done %s199, 8192
        $region40: #{tpu_custom_call.1} parent=35 // pred_fallthru
          _
        // Predicated region
        $region41: #{tpu_custom_call.1} parent=35 // pred_check
          %p207 = pneg %p64
        $region42: #{tpu_custom_call.1} parent=35 // pred_check_branch
          %209 = sbr.rel (%p207) target = $region44
        $region43: #{tpu_custom_call.1} parent=35 // pred_region
          %210 = dma.done [#allocation6], 2048
        $region44: #{tpu_custom_call.1} parent=35 // pred_fallthru
          _
        %s211 = sand.u32 %s30, 1
        %s212 = scalar_lea.sflag [#allocation3], %s211
        %s213 = sand.u32 %s30, 1
        %s214 = smul.addr %s213, 512
        %s215 = scalar_lea.vmem [#allocation2], %s214
        %p216 = pneg %p43
        %p217 = pneg %p40
        %p218 = pneg %p64
        %p219 = pneg %p61
        %p220 = pneg %p85
        %p221 = pneg %p82
        %p222 = pneg %p106
        %p223 = pneg %p103
        %p224 = pneg %p132
        %p225 = pneg %p129
        %s226 = sand.u32 %s119, 1
        %s227 = scalar_lea.sflag [#allocation4], %s226
        %s228 = sand.u32 %s119, 1
        %s229 = smul.addr %s228, 1024
        %s230 = scalar_lea.vmem [#allocation7], %s229
        %s231 = smul.u32 64, %s22
        %s232 = smul.u32 64, %s22
        %v234 = vld [vmem:[%s202] sm:$0xff]
        %v235 = vld [vmem:[%s202 + $0x8] sm:$0xff]
        %v236 = vld [vmem:[%s202 + $0x10] sm:$0xff]
        %v237 = vld [vmem:[%s202 + $0x18] sm:$0xff]
        %v238 = vld [vmem:[%s202 + $0x20] sm:$0xff]
        %v239 = vld [vmem:[%s202 + $0x28] sm:$0xff]
        %v240 = vld [vmem:[%s202 + $0x30] sm:$0xff]
        %v241 = vld [vmem:[%s202 + $0x38] sm:$0xff]
        %v242 = vld [vmem:[%s202 + $0x40] sm:$0xff]
        %v243 = vld [vmem:[%s202 + $0x48] sm:$0xff]
        %v244 = vld [vmem:[%s202 + $0x50] sm:$0xff]
        %v245 = vld [vmem:[%s202 + $0x58] sm:$0xff]
        %v246 = vld [vmem:[%s202 + $0x60] sm:$0xff]
        %v247 = vld [vmem:[%s202 + $0x68] sm:$0xff]
        %v248 = vld [vmem:[%s202 + $0x70] sm:$0xff]
        %v249 = vld [vmem:[%s202 + $0x78] sm:$0xff]
        %v250 = vld [vmem:[%s202 + $0x80] sm:$0xff]
        %v251 = vld [vmem:[%s202 + $0x88] sm:$0xff]
        %v252 = vld [vmem:[%s202 + $0x90] sm:$0xff]
        %v253 = vld [vmem:[%s202 + $0x98] sm:$0xff]
        %v254 = vld [vmem:[%s202 + $0xa0] sm:$0xff]
        %v255 = vld [vmem:[%s202 + $0xa8] sm:$0xff]
        %v256 = vld [vmem:[%s202 + $0xb0] sm:$0xff]
        %v257 = vld [vmem:[%s202 + $0xb8] sm:$0xff]
        %v258 = vld [vmem:[%s202 + $0xc0] sm:$0xff]
        %v259 = vld [vmem:[%s202 + $0xc8] sm:$0xff]
        %v260 = vld [vmem:[%s202 + $0xd0] sm:$0xff]
        %v261 = vld [vmem:[%s202 + $0xd8] sm:$0xff]
        %v262 = vld [vmem:[%s202 + $0xe0] sm:$0xff]
        %v263 = vld [vmem:[%s202 + $0xe8] sm:$0xff]
        %v264 = vld [vmem:[%s202 + $0xf0] sm:$0xff]
        %v265 = vld [vmem:[%s202 + $0xf8] sm:$0xff]
        %v266 = vld [vmem:[%s202 + $0x100] sm:$0xff]
        %v267 = vld [vmem:[%s202 + $0x108] sm:$0xff]
        %v268 = vld [vmem:[%s202 + $0x110] sm:$0xff]
        %v269 = vld [vmem:[%s202 + $0x118] sm:$0xff]
        %v270 = vld [vmem:[%s202 + $0x120] sm:$0xff]
        %v271 = vld [vmem:[%s202 + $0x128] sm:$0xff]
        %v272 = vld [vmem:[%s202 + $0x130] sm:$0xff]
        %v273 = vld [vmem:[%s202 + $0x138] sm:$0xff]
        %v274 = vld [vmem:[%s202 + $0x140] sm:$0xff]
        %v275 = vld [vmem:[%s202 + $0x148] sm:$0xff]
        %v276 = vld [vmem:[%s202 + $0x150] sm:$0xff]
        %v277 = vld [vmem:[%s202 + $0x158] sm:$0xff]
        %v278 = vld [vmem:[%s202 + $0x160] sm:$0xff]
        %v279 = vld [vmem:[%s202 + $0x168] sm:$0xff]
        %v280 = vld [vmem:[%s202 + $0x170] sm:$0xff]
        %v281 = vld [vmem:[%s202 + $0x178] sm:$0xff]
        %v282 = vld [vmem:[%s202 + $0x180] sm:$0xff]
        %v283 = vld [vmem:[%s202 + $0x188] sm:$0xff]
        %v284 = vld [vmem:[%s202 + $0x190] sm:$0xff]
        %v285 = vld [vmem:[%s202 + $0x198] sm:$0xff]
        %v286 = vld [vmem:[%s202 + $0x1a0] sm:$0xff]
        %v287 = vld [vmem:[%s202 + $0x1a8] sm:$0xff]
        %v288 = vld [vmem:[%s202 + $0x1b0] sm:$0xff]
        %v289 = vld [vmem:[%s202 + $0x1b8] sm:$0xff]
        %v290 = vld [vmem:[%s202 + $0x1c0] sm:$0xff]
        %v291 = vld [vmem:[%s202 + $0x1c8] sm:$0xff]
        %v292 = vld [vmem:[%s202 + $0x1d0] sm:$0xff]
        %v293 = vld [vmem:[%s202 + $0x1d8] sm:$0xff]
        %v294 = vld [vmem:[%s202 + $0x1e0] sm:$0xff]
        %v295 = vld [vmem:[%s202 + $0x1e8] sm:$0xff]
        %v296 = vld [vmem:[%s202 + $0x1f0] sm:$0xff]
        %v297 = vld [vmem:[%s202 + $0x1f8] sm:$0xff]
        %v298 = vpack.c.bf16 %v235, %v234
        %v299 = vpack.c.bf16 %v237, %v236
        %v300 = vpack.c.bf16 %v239, %v238
        %v301 = vpack.c.bf16 %v241, %v240
        %v302 = vpack.c.bf16 %v243, %v242
        %v303 = vpack.c.bf16 %v245, %v244
        %v304 = vpack.c.bf16 %v247, %v246
        %v305 = vpack.c.bf16 %v249, %v248
        %v306 = vpack.c.bf16 %v251, %v250
        %v307 = vpack.c.bf16 %v253, %v252
        %v308 = vpack.c.bf16 %v255, %v254
        %v309 = vpack.c.bf16 %v257, %v256
        %v310 = vpack.c.bf16 %v259, %v258
        %v311 = vpack.c.bf16 %v261, %v260
        %v312 = vpack.c.bf16 %v263, %v262
        %v313 = vpack.c.bf16 %v265, %v264
        %v314 = vpack.c.bf16 %v267, %v266
        %v315 = vpack.c.bf16 %v269, %v268
        %v316 = vpack.c.bf16 %v271, %v270
        %v317 = vpack.c.bf16 %v273, %v272
        %v318 = vpack.c.bf16 %v275, %v274
        %v319 = vpack.c.bf16 %v277, %v276
        %v320 = vpack.c.bf16 %v279, %v278
        %v321 = vpack.c.bf16 %v281, %v280
        %v322 = vpack.c.bf16 %v283, %v282
        %v323 = vpack.c.bf16 %v285, %v284
        %v324 = vpack.c.bf16 %v287, %v286
        %v325 = vpack.c.bf16 %v289, %v288
        %v326 = vpack.c.bf16 %v291, %v290
        %v327 = vpack.c.bf16 %v293, %v292
        %v328 = vpack.c.bf16 %v295, %v294
        %v329 = vpack.c.bf16 %v297, %v296
        %v330 = vld [vmem:[#allocation5] sm:$0xff]
        %v331 = vld [vmem:[#allocation5 + $0x8] sm:$0xff]
        %v332 = vld [vmem:[#allocation5 + $0x10] sm:$0xff]
        %v333 = vld [vmem:[#allocation5 + $0x18] sm:$0xff]
        %v334 = vld [vmem:[#allocation5 + $0x20] sm:$0xff]
        %v335 = vld [vmem:[#allocation5 + $0x28] sm:$0xff]
        %v336 = vld [vmem:[#allocation5 + $0x30] sm:$0xff]
        %v337 = vld [vmem:[#allocation5 + $0x38] sm:$0xff]
        %v338 = vld [vmem:[#allocation5 + $0x40] sm:$0xff]
        %v339 = vld [vmem:[#allocation5 + $0x48] sm:$0xff]
        %v340 = vld [vmem:[#allocation5 + $0x50] sm:$0xff]
        %v341 = vld [vmem:[#allocation5 + $0x58] sm:$0xff]
        %v342 = vld [vmem:[#allocation5 + $0x60] sm:$0xff]
        %v343 = vld [vmem:[#allocation5 + $0x68] sm:$0xff]
        %v344 = vld [vmem:[#allocation5 + $0x70] sm:$0xff]
        %v345 = vld [vmem:[#allocation5 + $0x78] sm:$0xff]
        %v362 = vunpack.c.l.b16 %v330
        %v363 = vunpack.c.h.b16 %v330
        %v364 = vunpack.c.l.b16 %v331
        %v365 = vunpack.c.h.b16 %v331
        %v366 = vunpack.c.l.b16 %v332
        %v367 = vunpack.c.h.b16 %v332
        %v368 = vunpack.c.l.b16 %v333
        %v369 = vunpack.c.h.b16 %v333
        %v370 = vunpack.c.l.b16 %v334
        %v371 = vunpack.c.h.b16 %v334
        %v372 = vunpack.c.l.b16 %v335
        %v373 = vunpack.c.h.b16 %v335
        %v374 = vunpack.c.l.b16 %v336
        %v375 = vunpack.c.h.b16 %v336
        %v376 = vunpack.c.l.b16 %v337
        %v377 = vunpack.c.h.b16 %v337
        %v378 = vunpack.c.l.b16 %v338
        %v379 = vunpack.c.h.b16 %v338
        %v380 = vunpack.c.l.b16 %v339
        %v381 = vunpack.c.h.b16 %v339
        %v382 = vunpack.c.l.b16 %v340
        %v383 = vunpack.c.h.b16 %v340
        %v384 = vunpack.c.l.b16 %v341
        %v385 = vunpack.c.h.b16 %v341
        %v386 = vunpack.c.l.b16 %v342
        %v387 = vunpack.c.h.b16 %v342
        %v388 = vunpack.c.l.b16 %v343
        %v389 = vunpack.c.h.b16 %v343
        %v390 = vunpack.c.l.b16 %v344
        %v391 = vunpack.c.h.b16 %v344
        %v392 = vunpack.c.l.b16 %v345
        %v393 = vunpack.c.h.b16 %v345
        %v394 = vpack.c.b16 %v364, %v362
        %v395 = vpack.c.b16 %v365, %v363
        %v396 = vpack.c.b16 %v368, %v366
        %v397 = vpack.c.b16 %v369, %v367
        %v398 = vpack.c.b16 %v372, %v370
        %v399 = vpack.c.b16 %v373, %v371
        %v400 = vpack.c.b16 %v376, %v374
        %v401 = vpack.c.b16 %v377, %v375
        %v402 = vpack.c.b16 %v380, %v378
        %v403 = vpack.c.b16 %v381, %v379
        %v404 = vpack.c.b16 %v384, %v382
        %v405 = vpack.c.b16 %v385, %v383
        %v406 = vpack.c.b16 %v388, %v386
        %v407 = vpack.c.b16 %v389, %v387
        %v408 = vpack.c.b16 %v392, %v390
        %v409 = vpack.c.b16 %v393, %v391
        %426 = vmatprep.subr.bf16.mxu0 %v409
        %427 = vmatpush1.bf16.msra.mxu0 %v408
        %428 = vmatprep.subr.bf16.mxu0 %v407
        %429 = vmatpush1.bf16.msra.mxu0 %v406
        %430 = vmatprep.subr.bf16.mxu0 %v405
        %431 = vmatpush1.bf16.msra.mxu0 %v404
        %432 = vmatprep.subr.bf16.mxu0 %v403
        %433 = vmatpush1.bf16.msra.mxu0 %v402
        %434 = vmatprep.subr.bf16.mxu0 %v401
        %435 = vmatpush1.bf16.msra.mxu0 %v400
        %436 = vmatprep.subr.bf16.mxu0 %v399
        %437 = vmatpush1.bf16.msra.mxu0 %v398
        %438 = vmatprep.subr.bf16.mxu0 %v397
        %439 = vmatpush1.bf16.msra.mxu0 %v396
        %440 = vmatprep.subr.bf16.mxu0 %v395
        %441 = vmatpush1.bf16.msra.mxu0 %v394
        %442 = vmatprep.subr.bf16.mxu0 0
        %443 = vmatpush2.bf16.msra.mxu0 0
        %444 = vmatprep.subr.bf16.mxu0 0
        %445 = vmatpush2.bf16.msra.mxu0 0
        %446 = vmatprep.subr.bf16.mxu0 0
        %447 = vmatpush2.bf16.msra.mxu0 0
        %448 = vmatprep.subr.bf16.mxu0 0
        %449 = vmatpush2.bf16.msra.mxu0 0
        %450 = vmatprep.subr.bf16.mxu0 0
        %451 = vmatpush2.bf16.msra.mxu0 0
        %452 = vmatprep.subr.bf16.mxu0 0
        %453 = vmatpush2.bf16.msra.mxu0 0
        %454 = vmatprep.subr.bf16.mxu0 0
        %455 = vmatpush2.bf16.msra.mxu0 0
        %456 = vmatprep.subr.bf16.mxu0 0
        %457 = vmatpush2.bf16.msra.mxu0 0
        %458 = vmatprep.mubr.bf16.mxu0 0
        %459 = vmatmul.mubr.bf16.gmra.mxu0 %v298
        %v460 = vpop.f32.mrf.mxu0
        %v461 = vadd.f32 0.0, %v460
        %v462 = vpop.f32.mrf.mxu0
        %v463 = vadd.f32 0.0, %v462
        %v464 = vpop.f32.mrf.mxu0
        %v465 = vadd.f32 0.0, %v464
        %v466 = vpop.f32.mrf.mxu0
        %v467 = vadd.f32 0.0, %v466
        %468 = vmatprep.mubr.bf16.mxu0 0
        %469 = vmatmul.mubr.bf16.gmra.mxu0 %v299
        %v470 = vpop.f32.mrf.mxu0
        %v471 = vadd.f32 0.0, %v470
        %v472 = vpop.f32.mrf.mxu0
        %v473 = vadd.f32 0.0, %v472
        %v474 = vpop.f32.mrf.mxu0
        %v475 = vadd.f32 0.0, %v474
        %v476 = vpop.f32.mrf.mxu0
        %v477 = vadd.f32 0.0, %v476
        %478 = vmatprep.mubr.bf16.mxu0 0
        %479 = vmatmul.mubr.bf16.gmra.mxu0 %v300
        %v480 = vpop.f32.mrf.mxu0
        %v481 = vadd.f32 0.0, %v480
        %v482 = vpop.f32.mrf.mxu0
        %v483 = vadd.f32 0.0, %v482
        %v484 = vpop.f32.mrf.mxu0
        %v485 = vadd.f32 0.0, %v484
        %v486 = vpop.f32.mrf.mxu0
        %v487 = vadd.f32 0.0, %v486
        %488 = vmatprep.mubr.bf16.mxu0 0
        %489 = vmatmul.mubr.bf16.gmra.mxu0 %v301
        %v490 = vpop.f32.mrf.mxu0
        %v491 = vadd.f32 0.0, %v490
        %v492 = vpop.f32.mrf.mxu0
        %v493 = vadd.f32 0.0, %v492
        %v494 = vpop.f32.mrf.mxu0
        %v495 = vadd.f32 0.0, %v494
        %v496 = vpop.f32.mrf.mxu0
        %v497 = vadd.f32 0.0, %v496
        %498 = vmatprep.mubr.bf16.mxu0 0
        %499 = vmatmul.mubr.bf16.gmra.mxu0 %v302
        %v500 = vpop.f32.mrf.mxu0
        %v501 = vadd.f32 0.0, %v500
        %v502 = vpop.f32.mrf.mxu0
        %v503 = vadd.f32 0.0, %v502
        %v504 = vpop.f32.mrf.mxu0
        %v505 = vadd.f32 0.0, %v504
        %v506 = vpop.f32.mrf.mxu0
        %v507 = vadd.f32 0.0, %v506
        %508 = vmatprep.mubr.bf16.mxu0 0
        %509 = vmatmul.mubr.bf16.gmra.mxu0 %v303
        %v510 = vpop.f32.mrf.mxu0
        %v511 = vadd.f32 0.0, %v510
        %v512 = vpop.f32.mrf.mxu0
        %v513 = vadd.f32 0.0, %v512
        %v514 = vpop.f32.mrf.mxu0
        %v515 = vadd.f32 0.0, %v514
        %v516 = vpop.f32.mrf.mxu0
        %v517 = vadd.f32 0.0, %v516
        %518 = vmatprep.mubr.bf16.mxu0 0
        %519 = vmatmul.mubr.bf16.gmra.mxu0 %v304
        %v520 = vpop.f32.mrf.mxu0
        %v521 = vadd.f32 0.0, %v520
        %v522 = vpop.f32.mrf.mxu0
        %v523 = vadd.f32 0.0, %v522
        %v524 = vpop.f32.mrf.mxu0
        %v525 = vadd.f32 0.0, %v524
        %v526 = vpop.f32.mrf.mxu0
        %v527 = vadd.f32 0.0, %v526
        %528 = vmatprep.mubr.bf16.mxu0 0
        %529 = vmatmul.mubr.bf16.gmra.mxu0 %v305
        %v530 = vpop.f32.mrf.mxu0
        %v531 = vadd.f32 0.0, %v530
        %v532 = vpop.f32.mrf.mxu0
        %v533 = vadd.f32 0.0, %v532
        %v534 = vpop.f32.mrf.mxu0
        %v535 = vadd.f32 0.0, %v534
        %v536 = vpop.f32.mrf.mxu0
        %v537 = vadd.f32 0.0, %v536
        %538 = vmatprep.mubr.bf16.mxu0 0
        %539 = vmatmul.mubr.bf16.gmra.mxu0 %v306
        %v540 = vpop.f32.mrf.mxu0
        %v541 = vadd.f32 0.0, %v540
        %v542 = vpop.f32.mrf.mxu0
        %v543 = vadd.f32 0.0, %v542
        %v544 = vpop.f32.mrf.mxu0
        %v545 = vadd.f32 0.0, %v544
        %v546 = vpop.f32.mrf.mxu0
        %v547 = vadd.f32 0.0, %v546
        %548 = vmatprep.mubr.bf16.mxu0 0
        %549 = vmatmul.mubr.bf16.gmra.mxu0 %v307
        %v550 = vpop.f32.mrf.mxu0
        %v551 = vadd.f32 0.0, %v550
        %v552 = vpop.f32.mrf.mxu0
        %v553 = vadd.f32 0.0, %v552
        %v554 = vpop.f32.mrf.mxu0
        %v555 = vadd.f32 0.0, %v554
        %v556 = vpop.f32.mrf.mxu0
        %v557 = vadd.f32 0.0, %v556
        %558 = vmatprep.mubr.bf16.mxu0 0
        %559 = vmatmul.mubr.bf16.gmra.mxu0 %v308
        %v560 = vpop.f32.mrf.mxu0
        %v561 = vadd.f32 0.0, %v560
        %v562 = vpop.f32.mrf.mxu0
        %v563 = vadd.f32 0.0, %v562
        %v564 = vpop.f32.mrf.mxu0
        %v565 = vadd.f32 0.0, %v564
        %v566 = vpop.f32.mrf.mxu0
        %v567 = vadd.f32 0.0, %v566
        %568 = vmatprep.mubr.bf16.mxu0 0
        %569 = vmatmul.mubr.bf16.gmra.mxu0 %v309
        %v570 = vpop.f32.mrf.mxu0
        %v571 = vadd.f32 0.0, %v570
        %v572 = vpop.f32.mrf.mxu0
        %v573 = vadd.f32 0.0, %v572
        %v574 = vpop.f32.mrf.mxu0
        %v575 = vadd.f32 0.0, %v574
        %v576 = vpop.f32.mrf.mxu0
        %v577 = vadd.f32 0.0, %v576
        %578 = vmatprep.mubr.bf16.mxu0 0
        %579 = vmatmul.mubr.bf16.gmra.mxu0 %v310
        %v580 = vpop.f32.mrf.mxu0
        %v581 = vadd.f32 0.0, %v580
        %v582 = vpop.f32.mrf.mxu0
        %v583 = vadd.f32 0.0, %v582
        %v584 = vpop.f32.mrf.mxu0
        %v585 = vadd.f32 0.0, %v584
        %v586 = vpop.f32.mrf.mxu0
        %v587 = vadd.f32 0.0, %v586
        %588 = vmatprep.mubr.bf16.mxu0 0
        %589 = vmatmul.mubr.bf16.gmra.mxu0 %v311
        %v590 = vpop.f32.mrf.mxu0
        %v591 = vadd.f32 0.0, %v590
        %v592 = vpop.f32.mrf.mxu0
        %v593 = vadd.f32 0.0, %v592
        %v594 = vpop.f32.mrf.mxu0
        %v595 = vadd.f32 0.0, %v594
        %v596 = vpop.f32.mrf.mxu0
        %v597 = vadd.f32 0.0, %v596
        %598 = vmatprep.mubr.bf16.mxu0 0
        %599 = vmatmul.mubr.bf16.gmra.mxu0 %v312
        %v600 = vpop.f32.mrf.mxu0
        %v601 = vadd.f32 0.0, %v600
        %v602 = vpop.f32.mrf.mxu0
        %v603 = vadd.f32 0.0, %v602
        %v604 = vpop.f32.mrf.mxu0
        %v605 = vadd.f32 0.0, %v604
        %v606 = vpop.f32.mrf.mxu0
        %v607 = vadd.f32 0.0, %v606
        %608 = vmatprep.mubr.bf16.mxu0 0
        %609 = vmatmul.mubr.bf16.gmra.mxu0 %v313
        %v610 = vpop.f32.mrf.mxu0
        %v611 = vadd.f32 0.0, %v610
        %v612 = vpop.f32.mrf.mxu0
        %v613 = vadd.f32 0.0, %v612
        %v614 = vpop.f32.mrf.mxu0
        %v615 = vadd.f32 0.0, %v614
        %v616 = vpop.f32.mrf.mxu0
        %v617 = vadd.f32 0.0, %v616
        %618 = vmatprep.mubr.bf16.mxu0 0
        %619 = vmatmul.mubr.bf16.gmra.mxu0 %v314
        %v620 = vpop.f32.mrf.mxu0
        %v621 = vadd.f32 0.0, %v620
        %v622 = vpop.f32.mrf.mxu0
        %v623 = vadd.f32 0.0, %v622
        %v624 = vpop.f32.mrf.mxu0
        %v625 = vadd.f32 0.0, %v624
        %v626 = vpop.f32.mrf.mxu0
        %v627 = vadd.f32 0.0, %v626
        %628 = vmatprep.mubr.bf16.mxu0 0
        %629 = vmatmul.mubr.bf16.gmra.mxu0 %v315
        %v630 = vpop.f32.mrf.mxu0
        %v631 = vadd.f32 0.0, %v630
        %v632 = vpop.f32.mrf.mxu0
        %v633 = vadd.f32 0.0, %v632
        %v634 = vpop.f32.mrf.mxu0
        %v635 = vadd.f32 0.0, %v634
        %v636 = vpop.f32.mrf.mxu0
        %v637 = vadd.f32 0.0, %v636
        %638 = vmatprep.mubr.bf16.mxu0 0
        %639 = vmatmul.mubr.bf16.gmra.mxu0 %v316
        %v640 = vpop.f32.mrf.mxu0
        %v641 = vadd.f32 0.0, %v640
        %v642 = vpop.f32.mrf.mxu0
        %v643 = vadd.f32 0.0, %v642
        %v644 = vpop.f32.mrf.mxu0
        %v645 = vadd.f32 0.0, %v644
        %v646 = vpop.f32.mrf.mxu0
        %v647 = vadd.f32 0.0, %v646
        %648 = vmatprep.mubr.bf16.mxu0 0
        %649 = vmatmul.mubr.bf16.gmra.mxu0 %v317
        %v650 = vpop.f32.mrf.mxu0
        %v651 = vadd.f32 0.0, %v650
        %v652 = vpop.f32.mrf.mxu0
        %v653 = vadd.f32 0.0, %v652
        %v654 = vpop.f32.mrf.mxu0
        %v655 = vadd.f32 0.0, %v654
        %v656 = vpop.f32.mrf.mxu0
        %v657 = vadd.f32 0.0, %v656
        %658 = vmatprep.mubr.bf16.mxu0 0
        %659 = vmatmul.mubr.bf16.gmra.mxu0 %v318
        %v660 = vpop.f32.mrf.mxu0
        %v661 = vadd.f32 0.0, %v660
        %v662 = vpop.f32.mrf.mxu0
        %v663 = vadd.f32 0.0, %v662
        %v664 = vpop.f32.mrf.mxu0
        %v665 = vadd.f32 0.0, %v664
        %v666 = vpop.f32.mrf.mxu0
        %v667 = vadd.f32 0.0, %v666
        %668 = vmatprep.mubr.bf16.mxu0 0
        %669 = vmatmul.mubr.bf16.gmra.mxu0 %v319
        %v670 = vpop.f32.mrf.mxu0
        %v671 = vadd.f32 0.0, %v670
        %v672 = vpop.f32.mrf.mxu0
        %v673 = vadd.f32 0.0, %v672
        %v674 = vpop.f32.mrf.mxu0
        %v675 = vadd.f32 0.0, %v674
        %v676 = vpop.f32.mrf.mxu0
        %v677 = vadd.f32 0.0, %v676
        %678 = vmatprep.mubr.bf16.mxu0 0
        %679 = vmatmul.mubr.bf16.gmra.mxu0 %v320
        %v680 = vpop.f32.mrf.mxu0
        %v681 = vadd.f32 0.0, %v680
        %v682 = vpop.f32.mrf.mxu0
        %v683 = vadd.f32 0.0, %v682
        %v684 = vpop.f32.mrf.mxu0
        %v685 = vadd.f32 0.0, %v684
        %v686 = vpop.f32.mrf.mxu0
        %v687 = vadd.f32 0.0, %v686
        %688 = vmatprep.mubr.bf16.mxu0 0
        %689 = vmatmul.mubr.bf16.gmra.mxu0 %v321
        %v690 = vpop.f32.mrf.mxu0
        %v691 = vadd.f32 0.0, %v690
        %v692 = vpop.f32.mrf.mxu0
        %v693 = vadd.f32 0.0, %v692
        %v694 = vpop.f32.mrf.mxu0
        %v695 = vadd.f32 0.0, %v694
        %v696 = vpop.f32.mrf.mxu0
        %v697 = vadd.f32 0.0, %v696
        %698 = vmatprep.mubr.bf16.mxu0 0
        %699 = vmatmul.mubr.bf16.gmra.mxu0 %v322
        %v700 = vpop.f32.mrf.mxu0
        %v701 = vadd.f32 0.0, %v700
        %v702 = vpop.f32.mrf.mxu0
        %v703 = vadd.f32 0.0, %v702
        %v704 = vpop.f32.mrf.mxu0
        %v705 = vadd.f32 0.0, %v704
        %v706 = vpop.f32.mrf.mxu0
        %v707 = vadd.f32 0.0, %v706
        %708 = vmatprep.mubr.bf16.mxu0 0
        %709 = vmatmul.mubr.bf16.gmra.mxu0 %v323
        %v710 = vpop.f32.mrf.mxu0
        %v711 = vadd.f32 0.0, %v710
        %v712 = vpop.f32.mrf.mxu0
        %v713 = vadd.f32 0.0, %v712
        %v714 = vpop.f32.mrf.mxu0
        %v715 = vadd.f32 0.0, %v714
        %v716 = vpop.f32.mrf.mxu0
        %v717 = vadd.f32 0.0, %v716
        %718 = vmatprep.mubr.bf16.mxu0 0
        %719 = vmatmul.mubr.bf16.gmra.mxu0 %v324
        %v720 = vpop.f32.mrf.mxu0
        %v721 = vadd.f32 0.0, %v720
        %v722 = vpop.f32.mrf.mxu0
        %v723 = vadd.f32 0.0, %v722
        %v724 = vpop.f32.mrf.mxu0
        %v725 = vadd.f32 0.0, %v724
        %v726 = vpop.f32.mrf.mxu0
        %v727 = vadd.f32 0.0, %v726
        %728 = vmatprep.mubr.bf16.mxu0 0
        %729 = vmatmul.mubr.bf16.gmra.mxu0 %v325
        %v730 = vpop.f32.mrf.mxu0
        %v731 = vadd.f32 0.0, %v730
        %v732 = vpop.f32.mrf.mxu0
        %v733 = vadd.f32 0.0, %v732
        %v734 = vpop.f32.mrf.mxu0
        %v735 = vadd.f32 0.0, %v734
        %v736 = vpop.f32.mrf.mxu0
        %v737 = vadd.f32 0.0, %v736
        %738 = vmatprep.mubr.bf16.mxu0 0
        %739 = vmatmul.mubr.bf16.gmra.mxu0 %v326
        %v740 = vpop.f32.mrf.mxu0
        %v741 = vadd.f32 0.0, %v740
        %v742 = vpop.f32.mrf.mxu0
        %v743 = vadd.f32 0.0, %v742
        %v744 = vpop.f32.mrf.mxu0
        %v745 = vadd.f32 0.0, %v744
        %v746 = vpop.f32.mrf.mxu0
        %v747 = vadd.f32 0.0, %v746
        %748 = vmatprep.mubr.bf16.mxu0 0
        %749 = vmatmul.mubr.bf16.gmra.mxu0 %v327
        %v750 = vpop.f32.mrf.mxu0
        %v751 = vadd.f32 0.0, %v750
        %v752 = vpop.f32.mrf.mxu0
        %v753 = vadd.f32 0.0, %v752
        %v754 = vpop.f32.mrf.mxu0
        %v755 = vadd.f32 0.0, %v754
        %v756 = vpop.f32.mrf.mxu0
        %v757 = vadd.f32 0.0, %v756
        %758 = vmatprep.mubr.bf16.mxu0 0
        %759 = vmatmul.mubr.bf16.gmra.mxu0 %v328
        %v760 = vpop.f32.mrf.mxu0
        %v761 = vadd.f32 0.0, %v760
        %v762 = vpop.f32.mrf.mxu0
        %v763 = vadd.f32 0.0, %v762
        %v764 = vpop.f32.mrf.mxu0
        %v765 = vadd.f32 0.0, %v764
        %v766 = vpop.f32.mrf.mxu0
        %v767 = vadd.f32 0.0, %v766
        %768 = vmatprep.mubr.bf16.mxu0 0
        %769 = vmatmul.mubr.bf16.gmra.mxu0 %v329
        %v770 = vpop.f32.mrf.mxu0
        %v771 = vadd.f32 0.0, %v770
        %v772 = vpop.f32.mrf.mxu0
        %v773 = vadd.f32 0.0, %v772
        %v774 = vpop.f32.mrf.mxu0
        %v775 = vadd.f32 0.0, %v774
        %v776 = vpop.f32.mrf.mxu0
        %v777 = vadd.f32 0.0, %v776
        %778 = vdwg.mxu0
        %v779 = vld [vmem:[%s2] sm:$0x3]
        %v781 = vlaneseq
        %v782 = vshrl.u32 %v781, 7
        %v783 = vsub.s32 0, %v782
        %v784 = vrot.slane %v779, %v783
        %v785 = vlaneseq
        %v786 = vshrl.u32 %v785, 7
        %v787 = vsub.s32 1, %v786
        %v788 = vrot.slane %v779, %v787
        %v791 = vmul.f32 %v461, %v784
        %v792 = vmul.f32 %v463, %v788
        %v793 = vmul.f32 %v465, %v784
        %v794 = vmul.f32 %v467, %v788
        %v795 = vmul.f32 %v471, %v784
        %v796 = vmul.f32 %v473, %v788
        %v797 = vmul.f32 %v475, %v784
        %v798 = vmul.f32 %v477, %v788
        %v799 = vmul.f32 %v481, %v784
        %v800 = vmul.f32 %v483, %v788
        %v801 = vmul.f32 %v485, %v784
        %v802 = vmul.f32 %v487, %v788
        %v803 = vmul.f32 %v491, %v784
        %v804 = vmul.f32 %v493, %v788
        %v805 = vmul.f32 %v495, %v784
        %v806 = vmul.f32 %v497, %v788
        %v807 = vmul.f32 %v501, %v784
        %v808 = vmul.f32 %v503, %v788
        %v809 = vmul.f32 %v505, %v784
        %v810 = vmul.f32 %v507, %v788
        %v811 = vmul.f32 %v511, %v784
        %v812 = vmul.f32 %v513, %v788
        %v813 = vmul.f32 %v515, %v784
        %v814 = vmul.f32 %v517, %v788
        %v815 = vmul.f32 %v521, %v784
        %v816 = vmul.f32 %v523, %v788
        %v817 = vmul.f32 %v525, %v784
        %v818 = vmul.f32 %v527, %v788
        %v819 = vmul.f32 %v531, %v784
        %v820 = vmul.f32 %v533, %v788
        %v821 = vmul.f32 %v535, %v784
        %v822 = vmul.f32 %v537, %v788
        %v823 = vmul.f32 %v541, %v784
        %v824 = vmul.f32 %v543, %v788
        %v825 = vmul.f32 %v545, %v784
        %v826 = vmul.f32 %v547, %v788
        %v827 = vmul.f32 %v551, %v784
        %v828 = vmul.f32 %v553, %v788
        %v829 = vmul.f32 %v555, %v784
        %v830 = vmul.f32 %v557, %v788
        %v831 = vmul.f32 %v561, %v784
        %v832 = vmul.f32 %v563, %v788
        %v833 = vmul.f32 %v565, %v784
        %v834 = vmul.f32 %v567, %v788
        %v835 = vmul.f32 %v571, %v784
        %v836 = vmul.f32 %v573, %v788
        %v837 = vmul.f32 %v575, %v784
        %v838 = vmul.f32 %v577, %v788
        %v839 = vmul.f32 %v581, %v784
        %v840 = vmul.f32 %v583, %v788
        %v841 = vmul.f32 %v585, %v784
        %v842 = vmul.f32 %v587, %v788
        %v843 = vmul.f32 %v591, %v784
        %v844 = vmul.f32 %v593, %v788
        %v845 = vmul.f32 %v595, %v784
        %v846 = vmul.f32 %v597, %v788
        %v847 = vmul.f32 %v601, %v784
        %v848 = vmul.f32 %v603, %v788
        %v849 = vmul.f32 %v605, %v784
        %v850 = vmul.f32 %v607, %v788
        %v851 = vmul.f32 %v611, %v784
        %v852 = vmul.f32 %v613, %v788
        %v853 = vmul.f32 %v615, %v784
        %v854 = vmul.f32 %v617, %v788
        %v855 = vmul.f32 %v621, %v784
        %v856 = vmul.f32 %v623, %v788
        %v857 = vmul.f32 %v625, %v784
        %v858 = vmul.f32 %v627, %v788
        %v859 = vmul.f32 %v631, %v784
        %v860 = vmul.f32 %v633, %v788
        %v861 = vmul.f32 %v635, %v784
        %v862 = vmul.f32 %v637, %v788
        %v863 = vmul.f32 %v641, %v784
        %v864 = vmul.f32 %v643, %v788
        %v865 = vmul.f32 %v645, %v784
        %v866 = vmul.f32 %v647, %v788
        %v867 = vmul.f32 %v651, %v784
        %v868 = vmul.f32 %v653, %v788
        %v869 = vmul.f32 %v655, %v784
        %v870 = vmul.f32 %v657, %v788
        %v871 = vmul.f32 %v661, %v784
        %v872 = vmul.f32 %v663, %v788
        %v873 = vmul.f32 %v665, %v784
        %v874 = vmul.f32 %v667, %v788
        %v875 = vmul.f32 %v671, %v784
        %v876 = vmul.f32 %v673, %v788
        %v877 = vmul.f32 %v675, %v784
        %v878 = vmul.f32 %v677, %v788
        %v879 = vmul.f32 %v681, %v784
        %v880 = vmul.f32 %v683, %v788
        %v881 = vmul.f32 %v685, %v784
        %v882 = vmul.f32 %v687, %v788
        %v883 = vmul.f32 %v691, %v784
        %v884 = vmul.f32 %v693, %v788
        %v885 = vmul.f32 %v695, %v784
        %v886 = vmul.f32 %v697, %v788
        %v887 = vmul.f32 %v701, %v784
        %v888 = vmul.f32 %v703, %v788
        %v889 = vmul.f32 %v705, %v784
        %v890 = vmul.f32 %v707, %v788
        %v891 = vmul.f32 %v711, %v784
        %v892 = vmul.f32 %v713, %v788
        %v893 = vmul.f32 %v715, %v784
        %v894 = vmul.f32 %v717, %v788
        %v895 = vmul.f32 %v721, %v784
        %v896 = vmul.f32 %v723, %v788
        %v897 = vmul.f32 %v725, %v784
        %v898 = vmul.f32 %v727, %v788
        %v899 = vmul.f32 %v731, %v784
        %v900 = vmul.f32 %v733, %v788
        %v901 = vmul.f32 %v735, %v784
        %v902 = vmul.f32 %v737, %v788
        %v903 = vmul.f32 %v741, %v784
        %v904 = vmul.f32 %v743, %v788
        %v905 = vmul.f32 %v745, %v784
        %v906 = vmul.f32 %v747, %v788
        %v907 = vmul.f32 %v751, %v784
        %v908 = vmul.f32 %v753, %v788
        %v909 = vmul.f32 %v755, %v784
        %v910 = vmul.f32 %v757, %v788
        %v911 = vmul.f32 %v761, %v784
        %v912 = vmul.f32 %v763, %v788
        %v913 = vmul.f32 %v765, %v784
        %v914 = vmul.f32 %v767, %v788
        %v915 = vmul.f32 %v771, %v784
        %v916 = vmul.f32 %v773, %v788
        %v917 = vmul.f32 %v775, %v784
        %v918 = vmul.f32 %v777, %v788
        %v919 = vld [vmem:[%s3] sm:$0x3]
        %v921 = vlaneseq
        %v922 = vshrl.u32 %v921, 7
        %v923 = vsub.s32 0, %v922
        %v924 = vrot.slane %v919, %v923
        %v925 = vlaneseq
        %v926 = vshrl.u32 %v925, 7
        %v927 = vsub.s32 1, %v926
        %v928 = vrot.slane %v919, %v927
        %v931 = vadd.f32 %v791, %v924
        %v932 = vadd.f32 %v792, %v928
        %v933 = vadd.f32 %v793, %v924
        %v934 = vadd.f32 %v794, %v928
        %v935 = vadd.f32 %v795, %v924
        %v936 = vadd.f32 %v796, %v928
        %v937 = vadd.f32 %v797, %v924
        %v938 = vadd.f32 %v798, %v928
        %v939 = vadd.f32 %v799, %v924
        %v940 = vadd.f32 %v800, %v928
        %v941 = vadd.f32 %v801, %v924
        %v942 = vadd.f32 %v802, %v928
        %v943 = vadd.f32 %v803, %v924
        %v944 = vadd.f32 %v804, %v928
        %v945 = vadd.f32 %v805, %v924
        %v946 = vadd.f32 %v806, %v928
        %v947 = vadd.f32 %v807, %v924
        %v948 = vadd.f32 %v808, %v928
        %v949 = vadd.f32 %v809, %v924
        %v950 = vadd.f32 %v810, %v928
        %v951 = vadd.f32 %v811, %v924
        %v952 = vadd.f32 %v812, %v928
        %v953 = vadd.f32 %v813, %v924
        %v954 = vadd.f32 %v814, %v928
        %v955 = vadd.f32 %v815, %v924
        %v956 = vadd.f32 %v816, %v928
        %v957 = vadd.f32 %v817, %v924
        %v958 = vadd.f32 %v818, %v928
        %v959 = vadd.f32 %v819, %v924
        %v960 = vadd.f32 %v820, %v928
        %v961 = vadd.f32 %v821, %v924
        %v962 = vadd.f32 %v822, %v928
        %v963 = vadd.f32 %v823, %v924
        %v964 = vadd.f32 %v824, %v928
        %v965 = vadd.f32 %v825, %v924
        %v966 = vadd.f32 %v826, %v928
        %v967 = vadd.f32 %v827, %v924
        %v968 = vadd.f32 %v828, %v928
        %v969 = vadd.f32 %v829, %v924
        %v970 = vadd.f32 %v830, %v928
        %v971 = vadd.f32 %v831, %v924
        %v972 = vadd.f32 %v832, %v928
        %v973 = vadd.f32 %v833, %v924
        %v974 = vadd.f32 %v834, %v928
        %v975 = vadd.f32 %v835, %v924
        %v976 = vadd.f32 %v836, %v928
        %v977 = vadd.f32 %v837, %v924
        %v978 = vadd.f32 %v838, %v928
        %v979 = vadd.f32 %v839, %v924
        %v980 = vadd.f32 %v840, %v928
        %v981 = vadd.f32 %v841, %v924
        %v982 = vadd.f32 %v842, %v928
        %v983 = vadd.f32 %v843, %v924
        %v984 = vadd.f32 %v844, %v928
        %v985 = vadd.f32 %v845, %v924
        %v986 = vadd.f32 %v846, %v928
        %v987 = vadd.f32 %v847, %v924
        %v988 = vadd.f32 %v848, %v928
        %v989 = vadd.f32 %v849, %v924
        %v990 = vadd.f32 %v850, %v928
        %v991 = vadd.f32 %v851, %v924
        %v992 = vadd.f32 %v852, %v928
        %v993 = vadd.f32 %v853, %v924
        %v994 = vadd.f32 %v854, %v928
        %v995 = vadd.f32 %v855, %v924
        %v996 = vadd.f32 %v856, %v928
        %v997 = vadd.f32 %v857, %v924
        %v998 = vadd.f32 %v858, %v928
        %v999 = vadd.f32 %v859, %v924
        %v1000 = vadd.f32 %v860, %v928
        %v1001 = vadd.f32 %v861, %v924
        %v1002 = vadd.f32 %v862, %v928
        %v1003 = vadd.f32 %v863, %v924
        %v1004 = vadd.f32 %v864, %v928
        %v1005 = vadd.f32 %v865, %v924
        %v1006 = vadd.f32 %v866, %v928
        %v1007 = vadd.f32 %v867, %v924
        %v1008 = vadd.f32 %v868, %v928
        %v1009 = vadd.f32 %v869, %v924
        %v1010 = vadd.f32 %v870, %v928
        %v1011 = vadd.f32 %v871, %v924
        %v1012 = vadd.f32 %v872, %v928
        %v1013 = vadd.f32 %v873, %v924
        %v1014 = vadd.f32 %v874, %v928
        %v1015 = vadd.f32 %v875, %v924
        %v1016 = vadd.f32 %v876, %v928
        %v1017 = vadd.f32 %v877, %v924
        %v1018 = vadd.f32 %v878, %v928
        %v1019 = vadd.f32 %v879, %v924
        %v1020 = vadd.f32 %v880, %v928
        %v1021 = vadd.f32 %v881, %v924
        %v1022 = vadd.f32 %v882, %v928
        %v1023 = vadd.f32 %v883, %v924
        %v1024 = vadd.f32 %v884, %v928
        %v1025 = vadd.f32 %v885, %v924
        %v1026 = vadd.f32 %v886, %v928
        %v1027 = vadd.f32 %v887, %v924
        %v1028 = vadd.f32 %v888, %v928
        %v1029 = vadd.f32 %v889, %v924
        %v1030 = vadd.f32 %v890, %v928
        %v1031 = vadd.f32 %v891, %v924
        %v1032 = vadd.f32 %v892, %v928
        %v1033 = vadd.f32 %v893, %v924
        %v1034 = vadd.f32 %v894, %v928
        %v1035 = vadd.f32 %v895, %v924
        %v1036 = vadd.f32 %v896, %v928
        %v1037 = vadd.f32 %v897, %v924
        %v1038 = vadd.f32 %v898, %v928
        %v1039 = vadd.f32 %v899, %v924
        %v1040 = vadd.f32 %v900, %v928
        %v1041 = vadd.f32 %v901, %v924
        %v1042 = vadd.f32 %v902, %v928
        %v1043 = vadd.f32 %v903, %v924
        %v1044 = vadd.f32 %v904, %v928
        %v1045 = vadd.f32 %v905, %v924
        %v1046 = vadd.f32 %v906, %v928
        %v1047 = vadd.f32 %v907, %v924
        %v1048 = vadd.f32 %v908, %v928
        %v1049 = vadd.f32 %v909, %v924
        %v1050 = vadd.f32 %v910, %v928
        %v1051 = vadd.f32 %v911, %v924
        %v1052 = vadd.f32 %v912, %v928
        %v1053 = vadd.f32 %v913, %v924
        %v1054 = vadd.f32 %v914, %v928
        %v1055 = vadd.f32 %v915, %v924
        %v1056 = vadd.f32 %v916, %v928
        %v1057 = vadd.f32 %v917, %v924
        %v1058 = vadd.f32 %v918, %v928
        %1059 = vst [vmem:[%s230] sm:$0xff] %v931
        %1060 = vst [vmem:[%s230 + $0x8] sm:$0xff] %v932
        %1061 = vst [vmem:[%s230 + $0x10] sm:$0xff] %v933
        %1062 = vst [vmem:[%s230 + $0x18] sm:$0xff] %v934
        %1063 = vst [vmem:[%s230 + $0x20] sm:$0xff] %v935
        %1064 = vst [vmem:[%s230 + $0x28] sm:$0xff] %v936
        %1065 = vst [vmem:[%s230 + $0x30] sm:$0xff] %v937
        %1066 = vst [vmem:[%s230 + $0x38] sm:$0xff] %v938
        %1067 = vst [vmem:[%s230 + $0x40] sm:$0xff] %v939
        %1068 = vst [vmem:[%s230 + $0x48] sm:$0xff] %v940
        %1069 = vst [vmem:[%s230 + $0x50] sm:$0xff] %v941
        %1070 = vst [vmem:[%s230 + $0x58] sm:$0xff] %v942
        %1071 = vst [vmem:[%s230 + $0x60] sm:$0xff] %v943
        %1072 = vst [vmem:[%s230 + $0x68] sm:$0xff] %v944
        %1073 = vst [vmem:[%s230 + $0x70] sm:$0xff] %v945
        %1074 = vst [vmem:[%s230 + $0x78] sm:$0xff] %v946
        %1075 = vst [vmem:[%s230 + $0x80] sm:$0xff] %v947
        %1076 = vst [vmem:[%s230 + $0x88] sm:$0xff] %v948
        %1077 = vst [vmem:[%s230 + $0x90] sm:$0xff] %v949
        %1078 = vst [vmem:[%s230 + $0x98] sm:$0xff] %v950
        %1079 = vst [vmem:[%s230 + $0xa0] sm:$0xff] %v951
        %1080 = vst [vmem:[%s230 + $0xa8] sm:$0xff] %v952
        %1081 = vst [vmem:[%s230 + $0xb0] sm:$0xff] %v953
        %1082 = vst [vmem:[%s230 + $0xb8] sm:$0xff] %v954
        %1083 = vst [vmem:[%s230 + $0xc0] sm:$0xff] %v955
        %1084 = vst [vmem:[%s230 + $0xc8] sm:$0xff] %v956
        %1085 = vst [vmem:[%s230 + $0xd0] sm:$0xff] %v957
        %1086 = vst [vmem:[%s230 + $0xd8] sm:$0xff] %v958
        %1087 = vst [vmem:[%s230 + $0xe0] sm:$0xff] %v959
        %1088 = vst [vmem:[%s230 + $0xe8] sm:$0xff] %v960
        %1089 = vst [vmem:[%s230 + $0xf0] sm:$0xff] %v961
        %1090 = vst [vmem:[%s230 + $0xf8] sm:$0xff] %v962
        %1091 = vst [vmem:[%s230 + $0x100] sm:$0xff] %v963
        %1092 = vst [vmem:[%s230 + $0x108] sm:$0xff] %v964
        %1093 = vst [vmem:[%s230 + $0x110] sm:$0xff] %v965
        %1094 = vst [vmem:[%s230 + $0x118] sm:$0xff] %v966
        %1095 = vst [vmem:[%s230 + $0x120] sm:$0xff] %v967
        %1096 = vst [vmem:[%s230 + $0x128] sm:$0xff] %v968
        %1097 = vst [vmem:[%s230 + $0x130] sm:$0xff] %v969
        %1098 = vst [vmem:[%s230 + $0x138] sm:$0xff] %v970
        %1099 = vst [vmem:[%s230 + $0x140] sm:$0xff] %v971
        %1100 = vst [vmem:[%s230 + $0x148] sm:$0xff] %v972
        %1101 = vst [vmem:[%s230 + $0x150] sm:$0xff] %v973
        %1102 = vst [vmem:[%s230 + $0x158] sm:$0xff] %v974
        %1103 = vst [vmem:[%s230 + $0x160] sm:$0xff] %v975
        %1104 = vst [vmem:[%s230 + $0x168] sm:$0xff] %v976
        %1105 = vst [vmem:[%s230 + $0x170] sm:$0xff] %v977
        %1106 = vst [vmem:[%s230 + $0x178] sm:$0xff] %v978
        %1107 = vst [vmem:[%s230 + $0x180] sm:$0xff] %v979
        %1108 = vst [vmem:[%s230 + $0x188] sm:$0xff] %v980
        %1109 = vst [vmem:[%s230 + $0x190] sm:$0xff] %v981
        %1110 = vst [vmem:[%s230 + $0x198] sm:$0xff] %v982
        %1111 = vst [vmem:[%s230 + $0x1a0] sm:$0xff] %v983
        %1112 = vst [vmem:[%s230 + $0x1a8] sm:$0xff] %v984
        %1113 = vst [vmem:[%s230 + $0x1b0] sm:$0xff] %v985
        %1114 = vst [vmem:[%s230 + $0x1b8] sm:$0xff] %v986
        %1115 = vst [vmem:[%s230 + $0x1c0] sm:$0xff] %v987
        %1116 = vst [vmem:[%s230 + $0x1c8] sm:$0xff] %v988
        %1117 = vst [vmem:[%s230 + $0x1d0] sm:$0xff] %v989
        %1118 = vst [vmem:[%s230 + $0x1d8] sm:$0xff] %v990
        %1119 = vst [vmem:[%s230 + $0x1e0] sm:$0xff] %v991
        %1120 = vst [vmem:[%s230 + $0x1e8] sm:$0xff] %v992
        %1121 = vst [vmem:[%s230 + $0x1f0] sm:$0xff] %v993
        %1122 = vst [vmem:[%s230 + $0x1f8] sm:$0xff] %v994
        %1123 = vst [vmem:[%s230 + $0x200] sm:$0xff] %v995
        %1124 = vst [vmem:[%s230 + $0x208] sm:$0xff] %v996
        %1125 = vst [vmem:[%s230 + $0x210] sm:$0xff] %v997
        %1126 = vst [vmem:[%s230 + $0x218] sm:$0xff] %v998
        %1127 = vst [vmem:[%s230 + $0x220] sm:$0xff] %v999
        %1128 = vst [vmem:[%s230 + $0x228] sm:$0xff] %v1000
        %1129 = vst [vmem:[%s230 + $0x230] sm:$0xff] %v1001
        %1130 = vst [vmem:[%s230 + $0x238] sm:$0xff] %v1002
        %1131 = vst [vmem:[%s230 + $0x240] sm:$0xff] %v1003
        %1132 = vst [vmem:[%s230 + $0x248] sm:$0xff] %v1004
        %1133 = vst [vmem:[%s230 + $0x250] sm:$0xff] %v1005
        %1134 = vst [vmem:[%s230 + $0x258] sm:$0xff] %v1006
        %1135 = vst [vmem:[%s230 + $0x260] sm:$0xff] %v1007
        %1136 = vst [vmem:[%s230 + $0x268] sm:$0xff] %v1008
        %1137 = vst [vmem:[%s230 + $0x270] sm:$0xff] %v1009
        %1138 = vst [vmem:[%s230 + $0x278] sm:$0xff] %v1010
        %1139 = vst [vmem:[%s230 + $0x280] sm:$0xff] %v1011
        %1140 = vst [vmem:[%s230 + $0x288] sm:$0xff] %v1012
        %1141 = vst [vmem:[%s230 + $0x290] sm:$0xff] %v1013
        %1142 = vst [vmem:[%s230 + $0x298] sm:$0xff] %v1014
        %1143 = vst [vmem:[%s230 + $0x2a0] sm:$0xff] %v1015
        %1144 = vst [vmem:[%s230 + $0x2a8] sm:$0xff] %v1016
        %1145 = vst [vmem:[%s230 + $0x2b0] sm:$0xff] %v1017
        %1146 = vst [vmem:[%s230 + $0x2b8] sm:$0xff] %v1018
        %1147 = vst [vmem:[%s230 + $0x2c0] sm:$0xff] %v1019
        %1148 = vst [vmem:[%s230 + $0x2c8] sm:$0xff] %v1020
        %1149 = vst [vmem:[%s230 + $0x2d0] sm:$0xff] %v1021
        %1150 = vst [vmem:[%s230 + $0x2d8] sm:$0xff] %v1022
        %1151 = vst [vmem:[%s230 + $0x2e0] sm:$0xff] %v1023
        %1152 = vst [vmem:[%s230 + $0x2e8] sm:$0xff] %v1024
        %1153 = vst [vmem:[%s230 + $0x2f0] sm:$0xff] %v1025
        %1154 = vst [vmem:[%s230 + $0x2f8] sm:$0xff] %v1026
        %1155 = vst [vmem:[%s230 + $0x300] sm:$0xff] %v1027
        %1156 = vst [vmem:[%s230 + $0x308] sm:$0xff] %v1028
        %1157 = vst [vmem:[%s230 + $0x310] sm:$0xff] %v1029
        %1158 = vst [vmem:[%s230 + $0x318] sm:$0xff] %v1030
        %1159 = vst [vmem:[%s230 + $0x320] sm:$0xff] %v1031
        %1160 = vst [vmem:[%s230 + $0x328] sm:$0xff] %v1032
        %1161 = vst [vmem:[%s230 + $0x330] sm:$0xff] %v1033
        %1162 = vst [vmem:[%s230 + $0x338] sm:$0xff] %v1034
        %1163 = vst [vmem:[%s230 + $0x340] sm:$0xff] %v1035
        %1164 = vst [vmem:[%s230 + $0x348] sm:$0xff] %v1036
        %1165 = vst [vmem:[%s230 + $0x350] sm:$0xff] %v1037
        %1166 = vst [vmem:[%s230 + $0x358] sm:$0xff] %v1038
        %1167 = vst [vmem:[%s230 + $0x360] sm:$0xff] %v1039
        %1168 = vst [vmem:[%s230 + $0x368] sm:$0xff] %v1040
        %1169 = vst [vmem:[%s230 + $0x370] sm:$0xff] %v1041
        %1170 = vst [vmem:[%s230 + $0x378] sm:$0xff] %v1042
        %1171 = vst [vmem:[%s230 + $0x380] sm:$0xff] %v1043
        %1172 = vst [vmem:[%s230 + $0x388] sm:$0xff] %v1044
        %1173 = vst [vmem:[%s230 + $0x390] sm:$0xff] %v1045
        %1174 = vst [vmem:[%s230 + $0x398] sm:$0xff] %v1046
        %1175 = vst [vmem:[%s230 + $0x3a0] sm:$0xff] %v1047
        %1176 = vst [vmem:[%s230 + $0x3a8] sm:$0xff] %v1048
        %1177 = vst [vmem:[%s230 + $0x3b0] sm:$0xff] %v1049
        %1178 = vst [vmem:[%s230 + $0x3b8] sm:$0xff] %v1050
        %1179 = vst [vmem:[%s230 + $0x3c0] sm:$0xff] %v1051
        %1180 = vst [vmem:[%s230 + $0x3c8] sm:$0xff] %v1052
        %1181 = vst [vmem:[%s230 + $0x3d0] sm:$0xff] %v1053
        %1182 = vst [vmem:[%s230 + $0x3d8] sm:$0xff] %v1054
        %1183 = vst [vmem:[%s230 + $0x3e0] sm:$0xff] %v1055
        %1184 = vst [vmem:[%s230 + $0x3e8] sm:$0xff] %v1056
        %1185 = vst [vmem:[%s230 + $0x3f0] sm:$0xff] %v1057
        %1186 = vst [vmem:[%s230 + $0x3f8] sm:$0xff] %v1058
        %s1187 = sand.u32 %s119, 1
        %s1188 = scalar_lea.sflag [#allocation4], %s1187
        %s1189 = sand.u32 %s119, 1
        %s1190 = smul.addr %s1189, 1024
        %s1191 = scalar_lea.vmem [#allocation7], %s1190
        // Predicated region
        $region45: #{tpu_custom_call.1} parent=35 // pred_check
          %p1192 = pneg %p129
        $region46: #{tpu_custom_call.1} parent=35 // pred_check_branch
          %1194 = sbr.rel (%p1192) target = $region48
        $region47: #{tpu_custom_call.1} parent=35 // pred_region
          %s1195 = smul.u32 64, %s22
          %s1197 = ssub.s32 16384, 16384
          %1198 = vsyncadd %s1188, %s1197
          %s1199 = smul.addr %s1195, 2
          %s1200 = smul.addr %s1199, 128
          %s1201 = scalar_lea.hbm %s4, %s1200
          %s1202 = sshll.u32 %s1191, 4
          %s1203 = int_to_ptr.vmem [resolvable:$true] %s1202
          %1208 = dma.vmem_to_hbm [thread:$0]  %s1203, 16384, %s1201, %s1188, 256, 256, 16
        $region48: #{tpu_custom_call.1} parent=35 // pred_fallthru
          _
      $region36: #{tpu_custom_call.1} parent=5 // pred_fallthru
        _
      %p1209 = scmp.le.s32.totalorder 2, %s17
      // Predicated region
      $region49: #{tpu_custom_call.1} parent=5 // pred_check
        %p1210 = pneg %p1209
      $region50: #{tpu_custom_call.1} parent=5 // pred_check_branch
        %1212 = sbr.rel (%p1210) target = $region52
      $region51: #{tpu_custom_call.1} parent=5 // pred_region
        %s1213 = ssub.s32 %s17, 2
        // Predicated region
        $region53: #{tpu_custom_call.1} parent=51 // pred_check
          %p1214 = pneg %p135
        $region54: #{tpu_custom_call.1} parent=51 // pred_check_branch
          %1216 = sbr.rel (%p1214) target = $region56
        $region55: #{tpu_custom_call.1} parent=51 // pred_region
          %s1217 = sand.u32 %s120, 1
          %s1218 = scalar_lea.sflag [#allocation4], %s1217
          %s1219 = sand.u32 %s120, 1
          %s1220 = smul.addr %s1219, 1024
          %s1221 = scalar_lea.vmem [#allocation7], %s1220
          %1222 = dma.done %s1218, 16384
        $region56: #{tpu_custom_call.1} parent=51 // pred_fallthru
          _
      $region52: #{tpu_custom_call.1} parent=5 // pred_fallthru
        _
    $region6: #{tpu_custom_call.1} parent=1 // loop_footer
      %s21 = sadd.s32 1, %s17
    $region7: #{tpu_custom_call.1} parent=1 // loop_footer_branch
      %16 = sbr.rel target = $region3
    $region8: #{tpu_custom_call.1} parent=1 // loop_exit
      _
    %1223 = vsyncpa [#allocation3], 1
    %s1224 = scalar_lea.sflag [#allocation3], 1
    %1225 = vsyncpa %s1224, 1
    %1226 = vsyncpa [#allocation6], 1
    %1227 = vsyncpa [#allocation4], 1
    %s1228 = scalar_lea.sflag [#allocation4], 1
    %1229 = vsyncpa %s1228, 1

</llo_original>
